<compile_context>
chip_gen: v5e
topology: v5e:2x2
jax: 0.10.0
libtpu: 0.0.40
codegen_flags: <defaults>
</compile_context>

<pallas_src>
import jax
import jax.numpy as jnp
from jax.experimental import pallas as pl
from jax.experimental.pallas import tpu as pltpu


def _round_up(x, m):
    return (x + m - 1) // m * m


def dqn_mlp_kernel(x_ref, w1_ref, b1_ref, w2_ref, b2_ref, o_ref):
    w1 = w1_ref[...]
    w2 = w2_ref[...]
    # hidden = tanh(x @ W1 + b1): MXU matmul (f32 accumulate), f32 bias/tanh.
    x = x_ref[...].astype(w1.dtype)
    h = jnp.dot(x, w1, preferred_element_type=jnp.float32) + b1_ref[...]
    h = jnp.tanh(h)
    # out = hidden @ W2 + b2
    out = jnp.dot(h.astype(w2.dtype), w2,
                  preferred_element_type=jnp.float32) + b2_ref[...]
    o_ref[...] = out.astype(o_ref.dtype)


def pad_params(w1, b1, w2, b2):
    """Zero-pad hidden/output feature dims up to multiples of 128 (lane-dense).

    Exact: tanh(0) = 0 and the padded rows of W2 are zero, so padded hidden
    lanes contribute nothing; padded output columns are sliced off later.
    """
    in_dim, hid = w1.shape
    out_dim = w2.shape[1]
    hid_p = _round_up(hid, 128)
    out_p = _round_up(out_dim, 128)
    w1p = jnp.zeros((in_dim, hid_p), w1.dtype).at[:, :hid].set(w1)
    b1p = jnp.zeros((1, hid_p), jnp.float32).at[:, :hid].set(
        b1.reshape(1, -1).astype(jnp.float32))
    w2p = jnp.zeros((hid_p, out_p), w2.dtype).at[:hid, :out_dim].set(w2)
    b2p = jnp.zeros((1, out_p), jnp.float32).at[:, :out_dim].set(
        b2.reshape(1, -1).astype(jnp.float32))
    return (w1p, b1p, w2p, b2p), out_dim


def dqn_forward(state, padded_params, out_dim, *, batch_tile=512):
    """state: (B, inputDim) -> (B, outputDim) == linear2(tanh(linear1(state)))."""
    w1, b1, w2, b2 = padded_params
    B, in_dim = state.shape
    hid_p = w1.shape[1]
    out_p = w2.shape[1]

    if B <= batch_tile:
        tile_b = _round_up(B, 8)            # sublane-align a single tile
        n_tiles = 1
    else:
        tile_b = batch_tile                 # multiple of 8 (and 256 for MXU fill)
        n_tiles = pl.cdiv(B, tile_b)
    b_pad = tile_b * n_tiles

    x = state
    if b_pad != B:
        x = jnp.zeros((b_pad, in_dim), state.dtype).at[:B, :].set(state)

    if n_tiles == 1:
        # Single block: no grid / pipeline machinery at all; everything sits
        # in VMEM for the duration of the kernel.
        vmem = pl.BlockSpec(memory_space=pltpu.MemorySpace.VMEM)
        out = pl.pallas_call(
            dqn_mlp_kernel,
            out_shape=jax.ShapeDtypeStruct((b_pad, out_p), jnp.float32),
            in_specs=[vmem, vmem, vmem, vmem, vmem],
            out_specs=vmem,
        )(x, w1, b1, w2, b2)
    else:
        # Batch-tiled path: weights/biases map to block (0, 0) every step so
        # they stay resident in VMEM; batch axis is "parallel" (v7x megacore).
        out = pl.pallas_call(
            dqn_mlp_kernel,
            out_shape=jax.ShapeDtypeStruct((b_pad, out_p), jnp.float32),
            grid=(n_tiles,),
            in_specs=[
                pl.BlockSpec((tile_b, in_dim), lambda i: (i, 0)),
                pl.BlockSpec((in_dim, hid_p), lambda i: (0, 0)),
                pl.BlockSpec((1, hid_p), lambda i: (0, 0)),
                pl.BlockSpec((hid_p, out_p), lambda i: (0, 0)),
                pl.BlockSpec((1, out_p), lambda i: (0, 0)),
            ],
            out_specs=pl.BlockSpec((tile_b, out_p), lambda i: (i, 0)),
            compiler_params=pltpu.CompilerParams(
                dimension_semantics=("parallel",)),
        )(x, w1, b1, w2, b2)

    return out[:B, :out_dim]


def init_params(key, input_dim, output_dim, hidden_dim,
                weight_dtype=jnp.float32):
    """nn.Linear-style U(-1/sqrt(fan_in), 1/sqrt(fan_in)) init.  Weights are
    stored pre-transposed as (in_features, out_features) so the kernel does
    x @ W + b (== PyTorch's x @ W.T + b).  Biases stay f32."""
    k1, k2, k3, k4 = jax.random.split(key, 4)
    bound1 = 1.0 / jnp.sqrt(jnp.float32(input_dim))
    bound2 = 1.0 / jnp.sqrt(jnp.float32(hidden_dim))
    w1 = jax.random.uniform(k1, (input_dim, hidden_dim), jnp.float32,
                            -bound1, bound1).astype(weight_dtype)
    b1 = jax.random.uniform(k2, (1, hidden_dim), jnp.float32, -bound1, bound1)
    w2 = jax.random.uniform(k3, (hidden_dim, output_dim), jnp.float32,
                            -bound2, bound2).astype(weight_dtype)
    b2 = jax.random.uniform(k4, (1, output_dim), jnp.float32, -bound2, bound2)
    return w1, b1, w2, b2


if __name__ == "__main__":
    input_dim, output_dim, hidden_dim = 16, 4, 32
    key = jax.random.PRNGKey(0)
    kx, kp, kx2 = jax.random.split(key, 3)

    # ---- small f32 check (single-tile, no-grid VMEM path) ----
    batch = 8
    state = jax.random.normal(kx, (batch, input_dim), jnp.float32)
    w1, b1, w2, b2 = init_params(kp, input_dim, output_dim, hidden_dim)
    padded, odim = pad_params(w1, b1, w2, b2)
    out = dqn_forward(state, padded, odim)
    jax.block_until_ready(out)
    ref = jnp.tanh(state @ w1 + b1) @ w2 + b2
    assert out.shape == (batch, output_dim)
    assert jnp.allclose(out, ref, atol=1e-5, rtol=1e-5)

    # ---- larger bf16-weight check (batch-tiled grid path, v6e/v7x MXU dtype) ----
    batch2 = 1000                                   # padded to 2 x 512-row tiles
    state2 = jax.random.normal(kx2, (batch2, input_dim), jnp.float32)
    w1b, w2b = w1.astype(jnp.bfloat16), w2.astype(jnp.bfloat16)
    padded_b, odim_b = pad_params(w1b, b1, w2b, b2)
    out2 = dqn_forward(state2, padded_b, odim_b, batch_tile=512)
    jax.block_until_ready(out2)
    ref2 = (jnp.tanh(state2 @ w1b.astype(jnp.float32) + b1)
            @ w2b.astype(jnp.float32) + b2)
    assert out2.shape == (batch2, output_dim)
    assert jnp.allclose(out2, ref2, atol=5e-2, rtol=5e-2)

    print("KERNEL_OK")
</pallas_src>

<mosaic_0001>
module attributes {stable_mosaic.version = 11 : i64} {
  func.func @dqn_mlp_kernel(%arg0: memref<8x16xf32, #tpu.memory_space<vmem>>, %arg1: memref<16x128xf32, #tpu.memory_space<vmem>>, %arg2: memref<1x128xf32, #tpu.memory_space<vmem>>, %arg3: memref<128x128xf32, #tpu.memory_space<vmem>>, %arg4: memref<1x128xf32, #tpu.memory_space<vmem>>, %arg5: memref<8x128xf32, #tpu.memory_space<vmem>>) attributes {dimension_semantics = [], scalar_prefetch = 0 : i64, scratch_operands = 0 : i64, tpu.core_type = #tpu.core_type<tc>} {
    %c0 = arith.constant 0 : index
    %c0_0 = arith.constant 0 : index
    %0 = vector.load %arg1[%c0, %c0_0] : memref<16x128xf32, #tpu.memory_space<vmem>>, vector<16x128xf32>
    %c0_1 = arith.constant 0 : index
    %c0_2 = arith.constant 0 : index
    %1 = vector.load %arg3[%c0_1, %c0_2] : memref<128x128xf32, #tpu.memory_space<vmem>>, vector<128x128xf32>
    %c0_3 = arith.constant 0 : index
    %c0_4 = arith.constant 0 : index
    %2 = vector.load %arg0[%c0_3, %c0_4] : memref<8x16xf32, #tpu.memory_space<vmem>>, vector<8x16xf32>
    %cst = arith.constant dense<0.000000e+00> : vector<8x128xf32>
    %3 = tpu.matmul %2, %0, %cst {dimension_numbers = #tpu.dot_dimension_numbers<[1], [0], [0], [1], [0, 0, 1, 1], [], []>} : vector<8x16xf32>, vector<16x128xf32>, vector<8x128xf32> -> vector<8x128xf32>
    %c0_5 = arith.constant 0 : index
    %c0_6 = arith.constant 0 : index
    %4 = vector.load %arg2[%c0_5, %c0_6] : memref<1x128xf32, #tpu.memory_space<vmem>>, vector<1x128xf32>
    %5 = vector.broadcast %4 : vector<1x128xf32> to vector<8x128xf32>
    %6 = arith.addf %3, %5 : vector<8x128xf32>
    %7 = math.tanh %6 : vector<8x128xf32>
    %cst_7 = arith.constant dense<0.000000e+00> : vector<8x128xf32>
    %8 = tpu.matmul %7, %1, %cst_7 {dimension_numbers = #tpu.dot_dimension_numbers<[1], [0], [0], [1], [0, 0, 1, 1], [], []>} : vector<8x128xf32>, vector<128x128xf32>, vector<8x128xf32> -> vector<8x128xf32>
    %c0_8 = arith.constant 0 : index
    %c0_9 = arith.constant 0 : index
    %9 = vector.load %arg4[%c0_8, %c0_9] : memref<1x128xf32, #tpu.memory_space<vmem>>, vector<1x128xf32>
    %10 = vector.broadcast %9 : vector<1x128xf32> to vector<8x128xf32>
    %11 = arith.addf %8, %10 : vector<8x128xf32>
    %c0_10 = arith.constant 0 : index
    %c0_11 = arith.constant 0 : index
    %12 = vector.load %arg5[%c0_10, %c0_11] : memref<8x128xf32, #tpu.memory_space<vmem>>, vector<8x128xf32>
    tpu.vector_store %arg5[%c0_10, %c0_11], %11 {strides = array<i32>} : memref<8x128xf32, #tpu.memory_space<vmem>>, vector<8x128xf32>,
    return
  }
}

</mosaic_0001>

<llo_original>
// kernel: tpu_custom_call.1
$region0: #{tpu_custom_call.1}
  #allocation0 [shape = 'u32[]', space=smem, size = 0x4, offset = 0x4, fixed_abs, tag = 'smem constant byte address 0x4 - core index']
  #allocation1 [shape = 'u32[72,128]{1,0:T(1,128)}', space=vmem, size = 0x9000, scoped, tag = 'internal scratch']
  %s0 = inlined_call_operand.hbm [shape: f32[8,16], index: 0, kind: input, shape index: {}]
  %s1 = inlined_call_operand.hbm [shape: f32[16,128], index: 1, kind: input, shape index: {}]
  %s2 = inlined_call_operand.vmem [shape: f32[1,128], index: 2, kind: input, shape index: {}]
  %s3 = inlined_call_operand.hbm [shape: f32[128,128], index: 3, kind: input, shape index: {}]
  %s4 = inlined_call_operand.vmem [shape: f32[1,128], index: 4, kind: input, shape index: {}]
  %s5 = inlined_call_operand.hbm [shape: f32[8,128], index: 5, kind: output, shape index: {}]
  %s6 = sld [smem:[#allocation0]]
  $region42: #{tpu_custom_call.1} parent=0
    _
  %s8 = ssub.s32 1, %s6
  %s9 = scalar_select 0, %s8, %s6
  $region1: #{tpu_custom_call.1} parent=0
    #allocation2 [shape = 'u8[4096]{0}', space=vmem, size = 0x1000, scoped, tag = 'input window, operand 0, single buffered']
    #allocation3 [shape = 's32[1]{0}', space=sflag, size = 0x4, scoped, tag = 'scoped memory for tpu_custom_call.1']
    #allocation4 [shape = 's32[1]{0}', space=sflag, size = 0x4, scoped, tag = 'scoped memory for tpu_custom_call.1']
    #allocation5 [shape = 'u8[8192]{0}', space=vmem, size = 0x2000, scoped, tag = 'input window, operand 1, single buffered']
    #allocation6 [shape = 's32[1]{0}', space=sflag, size = 0x4, scoped, tag = 'scoped memory for tpu_custom_call.1']
    #allocation7 [shape = 'u8[65536]{0}', space=vmem, size = 0x10000, scoped, tag = 'input window, operand 3, single buffered']
    #allocation8 [shape = 'u8[4096]{0}', space=vmem, size = 0x1000, scoped, tag = 'output window, operand 0, single buffered']
    %10 = vsyncpa [#allocation3], 0
    %11 = vsyncpa [#allocation6], 0
    %12 = vsyncpa [#allocation4], 0
    // Predicated region
    $region2: #{tpu_custom_call.1} parent=1 // pred_check
      _
    $region3: #{tpu_custom_call.1} parent=1 // pred_check_branch
      %14 = sbr.rel (0) target = $region5
    $region4: #{tpu_custom_call.1} parent=1 // pred_region
      %16 = vsyncadd [#allocation3], 0
      %s18 = sshll.u32 %s0, 4
      %s19 = int_to_ptr.hbm [resolvable:$true] %s18
      %s20 = sshll.u32 [#allocation2], 4
      %s21 = int_to_ptr.vmem [resolvable:$true] %s20
      %23 = dma.hbm_to_vmem [thread:$0]  %s19, 128, %s21, [#allocation3]
    $region5: #{tpu_custom_call.1} parent=1 // pred_fallthru
      _
    // Predicated region
    $region6: #{tpu_custom_call.1} parent=1 // pred_check
      _
    $region7: #{tpu_custom_call.1} parent=1 // pred_check_branch
      %25 = sbr.rel (0) target = $region9
    $region8: #{tpu_custom_call.1} parent=1 // pred_region
      %27 = vsyncadd [#allocation6], 0
      %s28 = sshll.u32 %s1, 4
      %s29 = int_to_ptr.hbm [resolvable:$true] %s28
      %s30 = sshll.u32 [#allocation5], 4
      %s31 = int_to_ptr.vmem [resolvable:$true] %s30
      %36 = dma.hbm_to_vmem [thread:$0]  %s29, 256, %s31, [#allocation6], 128, 128, 8
    $region9: #{tpu_custom_call.1} parent=1 // pred_fallthru
      _
    // Predicated region
    $region10: #{tpu_custom_call.1} parent=1 // pred_check
      _
    $region11: #{tpu_custom_call.1} parent=1 // pred_check_branch
      %38 = sbr.rel (0) target = $region13
    $region12: #{tpu_custom_call.1} parent=1 // pred_region
      _
    $region13: #{tpu_custom_call.1} parent=1 // pred_fallthru
      _
    // Predicated region
    $region14: #{tpu_custom_call.1} parent=1 // pred_check
      _
    $region15: #{tpu_custom_call.1} parent=1 // pred_check_branch
      %40 = sbr.rel (0) target = $region17
    $region16: #{tpu_custom_call.1} parent=1 // pred_region
      %42 = vsyncadd [#allocation6], 0
      %s43 = sshll.u32 %s3, 4
      %s44 = int_to_ptr.hbm [resolvable:$true] %s43
      %s45 = sshll.u32 [#allocation7], 4
      %s46 = int_to_ptr.vmem [resolvable:$true] %s45
      %51 = dma.hbm_to_vmem [thread:$0]  %s44, 2048, %s46, [#allocation6], 128, 128, 8
    $region17: #{tpu_custom_call.1} parent=1 // pred_fallthru
      _
    // Predicated region
    $region18: #{tpu_custom_call.1} parent=1 // pred_check
      _
    $region19: #{tpu_custom_call.1} parent=1 // pred_check_branch
      %53 = sbr.rel (0) target = $region21
    $region20: #{tpu_custom_call.1} parent=1 // pred_region
      _
    $region21: #{tpu_custom_call.1} parent=1 // pred_fallthru
      _
    // Predicated region
    $region22: #{tpu_custom_call.1} parent=1 // pred_check
      _
    $region23: #{tpu_custom_call.1} parent=1 // pred_check_branch
      %55 = sbr.rel (0) target = $region25
    $region24: #{tpu_custom_call.1} parent=1 // pred_region
      %57 = dma.done [#allocation3], 128
    $region25: #{tpu_custom_call.1} parent=1 // pred_fallthru
      _
    // Predicated region
    $region26: #{tpu_custom_call.1} parent=1 // pred_check
      _
    $region27: #{tpu_custom_call.1} parent=1 // pred_check_branch
      %59 = sbr.rel (0) target = $region29
    $region28: #{tpu_custom_call.1} parent=1 // pred_region
      %61 = dma.done [#allocation6], 256
    $region29: #{tpu_custom_call.1} parent=1 // pred_fallthru
      _
    // Predicated region
    $region30: #{tpu_custom_call.1} parent=1 // pred_check
      _
    $region31: #{tpu_custom_call.1} parent=1 // pred_check_branch
      %63 = sbr.rel (0) target = $region33
    $region32: #{tpu_custom_call.1} parent=1 // pred_region
      %65 = dma.done [#allocation6], 2048
    $region33: #{tpu_custom_call.1} parent=1 // pred_fallthru
      _
    %v66 = vld [vmem:[#allocation5] sm:$0xff]
    %v67 = vld [vmem:[#allocation5 + $0x8] sm:$0xff]
    %v68 = vld [vmem:[#allocation7] sm:$0xff]
    %v69 = vld [vmem:[#allocation7 + $0x8] sm:$0xff]
    %v70 = vld [vmem:[#allocation7 + $0x10] sm:$0xff]
    %v71 = vld [vmem:[#allocation7 + $0x18] sm:$0xff]
    %v72 = vld [vmem:[#allocation7 + $0x20] sm:$0xff]
    %v73 = vld [vmem:[#allocation7 + $0x28] sm:$0xff]
    %v74 = vld [vmem:[#allocation7 + $0x30] sm:$0xff]
    %v75 = vld [vmem:[#allocation7 + $0x38] sm:$0xff]
    %v76 = vld [vmem:[#allocation7 + $0x40] sm:$0xff]
    %v77 = vld [vmem:[#allocation7 + $0x48] sm:$0xff]
    %v78 = vld [vmem:[#allocation7 + $0x50] sm:$0xff]
    %v79 = vld [vmem:[#allocation7 + $0x58] sm:$0xff]
    %v80 = vld [vmem:[#allocation7 + $0x60] sm:$0xff]
    %v81 = vld [vmem:[#allocation7 + $0x68] sm:$0xff]
    %v82 = vld [vmem:[#allocation7 + $0x70] sm:$0xff]
    %v83 = vld [vmem:[#allocation7 + $0x78] sm:$0xff]
    %v84 = vld [vmem:[#allocation2] sm:$0xff]
    %v85 = vld [vmem:[%s2] sm:$0x1]
    %v87 = vperm.slane %v85, 0
    %vm89 = vcmask 130048
    %v91 = vsel %vm89, %v84, 0
    %93 = vmatpush.msra.mxu0 0.0
    %94 = vmatpush.msra.mxu0 0.0
    %95 = vmatpush.msra.mxu0 0.0
    %96 = vmatpush.msra.mxu0 0.0
    %97 = vmatpush.msra.mxu0 0.0
    %98 = vmatpush.msra.mxu0 0.0
    %99 = vmatpush.msra.mxu0 0.0
    %100 = vmatpush.msra.mxu0 0.0
    %101 = vmatpush.msra.mxu0 0.0
    %102 = vmatpush.msra.mxu0 0.0
    %103 = vmatpush.msra.mxu0 0.0
    %104 = vmatpush.msra.mxu0 0.0
    %105 = vmatpush.msra.mxu0 0.0
    %106 = vmatpush.msra.mxu0 0.0
    %107 = vmatpush.msra.mxu0 %v67
    %108 = vmatpush.msra.mxu0 %v66
    %109 = vmatmul.f32.gmra.mxu0 %v91
    %v110 = vpop.f32.mrf.mxu0
    %v111 = vadd.f32 %v87, %v110
    %112 = vdwg.mxu0
    %v113 = vtanh.pop %v111
    %v114 = vld [vmem:[%s4] sm:$0x1]
    %v116 = vperm.slane %v114, 0
    %118 = vmatpush.msra.mxu0 %v83
    %119 = vmatpush.msra.mxu0 %v82
    %120 = vmatpush.msra.mxu0 %v81
    %121 = vmatpush.msra.mxu0 %v80
    %122 = vmatpush.msra.mxu0 %v79
    %123 = vmatpush.msra.mxu0 %v78
    %124 = vmatpush.msra.mxu0 %v77
    %125 = vmatpush.msra.mxu0 %v76
    %126 = vmatpush.msra.mxu0 %v75
    %127 = vmatpush.msra.mxu0 %v74
    %128 = vmatpush.msra.mxu0 %v73
    %129 = vmatpush.msra.mxu0 %v72
    %130 = vmatpush.msra.mxu0 %v71
    %131 = vmatpush.msra.mxu0 %v70
    %132 = vmatpush.msra.mxu0 %v69
    %133 = vmatpush.msra.mxu0 %v68
    %134 = vmatmul.f32.gmra.mxu0 %v113
    %v135 = vpop.f32.mrf.mxu0
    %v136 = vadd.f32 %v116, %v135
    %137 = vdwg.mxu0
    %138 = vst [vmem:[#allocation8] sm:$0xff] %v136
    // Predicated region
    $region34: #{tpu_custom_call.1} parent=1 // pred_check
      _
    $region35: #{tpu_custom_call.1} parent=1 // pred_check_branch
      %140 = sbr.rel (0) target = $region37
    $region36: #{tpu_custom_call.1} parent=1 // pred_region
      %142 = vsyncadd [#allocation4], 0
      %s144 = sshll.u32 [#allocation8], 4
      %s145 = int_to_ptr.vmem [resolvable:$true] %s144
      %s146 = sshll.u32 %s5, 4
      %s147 = int_to_ptr.hbm [resolvable:$true] %s146
      %149 = dma.vmem_to_hbm [thread:$0]  %s145, 128, %s147, [#allocation4]
    $region37: #{tpu_custom_call.1} parent=1 // pred_fallthru
      _
    // Predicated region
    $region38: #{tpu_custom_call.1} parent=1 // pred_check
      _
    $region39: #{tpu_custom_call.1} parent=1 // pred_check_branch
      %151 = sbr.rel (0) target = $region41
    $region40: #{tpu_custom_call.1} parent=1 // pred_region
      %153 = dma.done [#allocation4], 128
    $region41: #{tpu_custom_call.1} parent=1 // pred_fallthru
      _
    %154 = vsyncpa [#allocation3], 1
    %155 = vsyncpa [#allocation6], 1
    %156 = vsyncpa [#allocation4], 1

</llo_original>
